<compile_context>
chip_gen: v7x
topology: tpu7x:2x2x1
jax: 0.10.0
libtpu: 0.0.40
codegen_flags: <defaults>
</compile_context>

<pallas_src>
import functools

import jax
import jax.numpy as jnp
from jax.experimental import pallas as pl
from jax.experimental.pallas import tpu as pltpu

ALPHA = 1.0
GAMMA = 2  # focal exponent; handled as an explicit square inside the kernel

_LANE = 128


def _round_up(x, m):
    return ((x + m - 1) // m) * m


def _focal_loss_kernel(logits_ref, targets_ref, out_ref, *, tile_rows, n_true):
    # logits_ref : [tile_rows, C]  (f32 or bf16)
    # targets_ref: [tile_rows, 1]  int32
    # out_ref    : [1, 1, 1]       f32 per-tile partial sum of focal loss
    i = pl.program_id(0)

    x = logits_ref[...].astype(jnp.float32)          # [T, C]
    tgt = targets_ref[...]                           # [T, 1] int32

    # Numerically-stable logsumexp along the (lane) class axis.
    m = jnp.max(x, axis=-1, keepdims=True)           # [T, 1]
    shifted = x - m                                  # [T, C]
    lse = jnp.log(jnp.sum(jnp.exp(shifted), axis=-1, keepdims=True))  # [T, 1]

    # Target log-prob via a fused one-hot select-reduce (no onehot materialize).
    col = jax.lax.broadcasted_iota(jnp.int32, shifted.shape, 1)        # [T, C]
    tgt_shift = jnp.sum(jnp.where(col == tgt, shifted, 0.0),
                        axis=-1, keepdims=True)                        # [T, 1]
    tgt_logp = tgt_shift - lse                                         # [T, 1]

    ce = -tgt_logp                                   # per-sample cross entropy
    pt = jnp.exp(tgt_logp)
    one_minus_pt = 1.0 - pt
    focal = one_minus_pt * one_minus_pt * ce         # gamma == 2: explicit square

    # Mask rows past the true N (ragged last block).  Must stay a select so
    # NaN/Inf from garbage rows cannot propagate into the partial sum.
    row = jax.lax.broadcasted_iota(jnp.int32, (tile_rows, 1), 0)
    valid = (i * tile_rows + row) < n_true
    focal = jnp.where(valid, focal, 0.0)

    out_ref[...] = jnp.sum(focal, axis=(0, 1), keepdims=True).reshape(1, 1, 1)


def focal_loss(logits, targets, *, alpha=ALPHA):
    """Mean focal loss. logits: [N, C] float (f32 or bf16), targets: [N] int -> scalar f32."""
    n, c = logits.shape
    itemsize = jnp.dtype(logits.dtype).itemsize

    # Native sublane packing: 8 rows/vreg for f32, 16 for bf16.
    sublane = max(8, 32 // itemsize)

    # Per-row VMEM bytes per buffer: lane-padded logits row + lane-padded
    # (x, 1) int32 targets row (128 lanes * 4 B = 512 B).
    c_lanes = _round_up(c, _LANE)
    bytes_per_row = c_lanes * itemsize + _LANE * 4

    # ~6 MiB per buffer set -> ~12 MiB double-buffered: fits the v5e 16 MiB
    # scoped-VMEM default and is well inside v6e/v7x limits, while big enough
    # to sit near the HBM roofline for small/medium C.
    budget_per_buffer = 6 * 1024 * 1024
    tile_rows = max(sublane, (budget_per_buffer // bytes_per_row) // sublane * sublane)
    tile_rows = min(tile_rows, _round_up(n, sublane))

    num_tiles = pl.cdiv(n, tile_rows)
    targets2d = targets.astype(jnp.int32).reshape(n, 1)

    kernel = functools.partial(_focal_loss_kernel, tile_rows=tile_rows, n_true=n)

    partials = pl.pallas_call(
        kernel,
        out_shape=jax.ShapeDtypeStruct((num_tiles, 1, 1), jnp.float32),
        grid=(num_tiles,),
        in_specs=[
            pl.BlockSpec((tile_rows, c), lambda i: (i, 0)),
            pl.BlockSpec((tile_rows, 1), lambda i: (i, 0)),
        ],
        out_specs=pl.BlockSpec((1, 1, 1), lambda i: (i, 0, 0)),
        compiler_params=pltpu.CompilerParams(
            dimension_semantics=("parallel",),   # independent per-tile partials
            vmem_limit_bytes=32 * 1024 * 1024,
        ),
        cost_estimate=pl.CostEstimate(
            flops=6 * n * c,
            transcendentals=n * c + 2 * n,
            bytes_accessed=n * c * itemsize + n * 4 + num_tiles * 4,
        ),
    )(logits, targets2d)

    # reduction='mean' over the true batch; alpha folded in here.
    return jnp.sum(partials) * (alpha / n)


def focal_loss_ref(logits, targets, *, alpha=ALPHA, gamma=GAMMA):
    # pure-JAX reference mirroring the PyTorch forward
    logp = jax.nn.log_softmax(logits.astype(jnp.float32), axis=-1)
    ce = -jnp.take_along_axis(logp, targets[:, None].astype(jnp.int32), axis=-1)[:, 0]
    pt = jnp.exp(-ce)
    focal = alpha * (1.0 - pt) ** gamma * ce
    return jnp.mean(focal)


if __name__ == "__main__":
    key = jax.random.PRNGKey(0)
    k1, k2 = jax.random.split(key)

    N, C = 8, 32  # batch of 8 samples, 32 classes
    logits = jax.random.normal(k1, (N, C), dtype=jnp.float32)
    targets = jax.random.randint(k2, (N,), 0, C, dtype=jnp.int32)

    out = focal_loss(logits, targets)
    out = jax.block_until_ready(out)

    ref = focal_loss_ref(logits, targets)
    assert jnp.allclose(out, ref, rtol=1e-5, atol=1e-5), (out, ref)

    print("KERNEL_OK")
</pallas_src>

<mosaic_0001>
module attributes {stable_mosaic.version = 11 : i64} {
  func.func @_focal_loss_kernel(%arg0: i32, %arg1: memref<8x32xf32, #tpu.memory_space<vmem>>, %arg2: memref<8x1xi32, #tpu.memory_space<vmem>>, %arg3: memref<1x1x1xf32, #tpu.memory_space<vmem>>) attributes {dimension_semantics = [#tpu.dimension_semantics<parallel>], iteration_bounds = array<i64: 1>, scalar_prefetch = 0 : i64, scratch_operands = 0 : i64, tpu.core_type = #tpu.core_type<tc>, window_params = [{transform_indices = @transform_0, window_bounds = array<i64: 8, 32>}, {transform_indices = @transform_1, window_bounds = array<i64: 8, 1>}, {transform_indices = @transform_2, window_bounds = array<i64: 1, 1, 1>}]} {
    %c0 = arith.constant 0 : index
    %c0_0 = arith.constant 0 : index
    %0 = vector.load %arg1[%c0, %c0_0] : memref<8x32xf32, #tpu.memory_space<vmem>>, vector<8x32xf32>
    %c0_1 = arith.constant 0 : index
    %c0_2 = arith.constant 0 : index
    %1 = vector.load %arg2[%c0_1, %c0_2] : memref<8x1xi32, #tpu.memory_space<vmem>>, vector<8x1xi32>
    %cst = arith.constant dense<0xFF800000> : vector<8xf32>
    %2 = vector.multi_reduction <maximumf>, %0, %cst [1] : vector<8x32xf32> to vector<8xf32>
    %3 = vector.shape_cast %2 : vector<8xf32> to vector<8x1xf32>
    %4 = vector.broadcast %3 : vector<8x1xf32> to vector<8x32xf32>
    %5 = arith.subf %0, %4 : vector<8x32xf32>
    %6 = math.exp %5 : vector<8x32xf32>
    %cst_3 = arith.constant dense<0.000000e+00> : vector<8xf32>
    %7 = vector.multi_reduction <add>, %6, %cst_3 [1] : vector<8x32xf32> to vector<8xf32>
    %8 = vector.shape_cast %7 : vector<8xf32> to vector<8x1xf32>
    %9 = math.log %8 : vector<8x1xf32>
    %10 = tpu.iota {dimensions = array<i32: 1>} : vector<8x32xi32>
    %11 = vector.broadcast %1 : vector<8x1xi32> to vector<8x32xi32>
    %12 = arith.cmpi eq, %10, %11 : vector<8x32xi32>
    %cst_4 = arith.constant 0.000000e+00 : f32
    %13 = vector.broadcast %cst_4 : f32 to vector<8x32xf32>
    %14 = arith.select %12, %5, %13 : vector<8x32xi1>, vector<8x32xf32>
    %cst_5 = arith.constant dense<0.000000e+00> : vector<8xf32>
    %15 = vector.multi_reduction <add>, %14, %cst_5 [1] : vector<8x32xf32> to vector<8xf32>
    %16 = vector.shape_cast %15 : vector<8xf32> to vector<8x1xf32>
    %17 = arith.subf %16, %9 : vector<8x1xf32>
    %cst_6 = arith.constant 0.000000e+00 : f32
    %18 = vector.broadcast %cst_6 : f32 to vector<8x1xf32>
    %19 = arith.subf %18, %17 : vector<8x1xf32>
    %20 = math.exp %17 : vector<8x1xf32>
    %cst_7 = arith.constant 1.000000e+00 : f32
    %21 = vector.broadcast %cst_7 : f32 to vector<8x1xf32>
    %22 = arith.subf %21, %20 : vector<8x1xf32>
    %23 = arith.mulf %22, %22 : vector<8x1xf32>
    %24 = arith.mulf %23, %19 : vector<8x1xf32>
    %25 = tpu.iota {dimensions = array<i32: 0>} : vector<8x1xi32>
    %c8_i32 = arith.constant 8 : i32
    %26 = arith.muli %arg0, %c8_i32 : i32
    %27 = vector.broadcast %26 : i32 to vector<8x1xi32>
    %28 = arith.addi %27, %25 : vector<8x1xi32>
    %c8_i32_8 = arith.constant 8 : i32
    %29 = vector.broadcast %c8_i32_8 : i32 to vector<8x1xi32>
    %30 = arith.cmpi slt, %28, %29 : vector<8x1xi32>
    %cst_9 = arith.constant 0.000000e+00 : f32
    %31 = vector.broadcast %cst_9 : f32 to vector<8x1xf32>
    %32 = arith.select %30, %24, %31 : vector<8x1xi1>, vector<8x1xf32>
    %33 = vector.shape_cast %32 : vector<8x1xf32> to vector<1x8x1xf32>
    %cst_10 = arith.constant dense<0.000000e+00> : vector<1xf32>
    %34 = vector.multi_reduction <add>, %33, %cst_10 [1, 2] : vector<1x8x1xf32> to vector<1xf32>
    %35 = vector.shape_cast %34 : vector<1xf32> to vector<1x1x1xf32>
    %36 = vector.extract %35[0, 0, 0] : f32 from vector<1x1x1xf32>
    %37 = vector.broadcast %36 : f32 to vector<1x1xf32>
    %38 = vector.shape_cast %37 : vector<1x1xf32> to vector<1x1x1xf32>
    %c0_11 = arith.constant 0 : index
    %c0_12 = arith.constant 0 : index
    %c0_13 = arith.constant 0 : index
    %39 = vector.load %arg3[%c0_11, %c0_12, %c0_13] : memref<1x1x1xf32, #tpu.memory_space<vmem>>, vector<1x1x1xf32>
    tpu.vector_store %arg3[%c0_11, %c0_12, %c0_13], %38 {strides = array<i32>} : memref<1x1x1xf32, #tpu.memory_space<vmem>>, vector<1x1x1xf32>,
    return
  }
  func.func @transform_0(%arg0: i32) -> (i32, i32) {
    %c0_i32 = arith.constant 0 : i32
    %c0_i32_0 = arith.constant 0 : i32
    return %arg0, %c0_i32 : i32, i32
  }
  func.func @transform_1(%arg0: i32) -> (i32, i32) {
    %c0_i32 = arith.constant 0 : i32
    %c0_i32_0 = arith.constant 0 : i32
    return %arg0, %c0_i32 : i32, i32
  }
  func.func @transform_2(%arg0: i32) -> (i32, i32, i32) {
    %c0_i32 = arith.constant 0 : i32
    %c0_i32_0 = arith.constant 0 : i32
    %c0_i32_1 = arith.constant 0 : i32
    return %arg0, %c0_i32, %c0_i32_0 : i32, i32, i32
  }
}

</mosaic_0001>

<llo_original>
// kernel: tpu_custom_call.1
$region0: #{tpu_custom_call.1}
  #allocation0 [shape = 'u32[]', space=smem, size = 0x4, offset = 0x4, fixed_abs, tag = 'smem constant byte address 0x4 - core index']
  #allocation1 [shape = 'u32[144,128]{1,0:T(1,128)}', space=vmem, size = 0x12000, scoped, tag = 'internal scratch']
  %s0 = inlined_call_operand.vmem [shape: f32[8,32], index: 0, kind: input, shape index: {}]
  %s1 = inlined_call_operand.vmem [shape: s32[8,1], index: 1, kind: input, shape index: {}]
  %s2 = inlined_call_operand.hbm [shape: f32[1,1,1], index: 2, kind: output, shape index: {}]
  %s3 = sld [smem:[#allocation0]]
  $region18: #{tpu_custom_call.1} parent=0
    _
  %s5 = ssub.s32 1, %s3
  %s6 = scalar_select 0, %s5, %s3
  $region1: #{tpu_custom_call.1} parent=0
    #allocation2 [shape = 'u8[512]{0}', space=vmem, size = 0x400, scoped, tag = 'output window, operand 0, single buffered']
    #allocation3 [shape = 's32[1]{0}', space=sflag, size = 0x4, scoped, tag = 'scoped memory for tpu_custom_call.1']
    %7 = vsyncpa [#allocation3], 0
    // Predicated region
    $region2: #{tpu_custom_call.1} parent=1 // pred_check
      _
    $region3: #{tpu_custom_call.1} parent=1 // pred_check_branch
      %9 = sbr.rel (0) target = $region5
    $region4: #{tpu_custom_call.1} parent=1 // pred_region
      _
    $region5: #{tpu_custom_call.1} parent=1 // pred_fallthru
      _
    // Predicated region
    $region6: #{tpu_custom_call.1} parent=1 // pred_check
      _
    $region7: #{tpu_custom_call.1} parent=1 // pred_check_branch
      %11 = sbr.rel (0) target = $region9
    $region8: #{tpu_custom_call.1} parent=1 // pred_region
      _
    $region9: #{tpu_custom_call.1} parent=1 // pred_fallthru
      _
    %v12 = vld [vmem:[%s0] sm:$0xff]
    %v13 = vld [vmem:[%s1] sm:$0xff]
    %vm14 = vcmask 261120
    %v15 = vsel %vm14, %v12, -inf
    %16 = vmax.xlane.f32.xlu0 %v15
    %v17 = vpop.xlane.xlu0 %16
    %v18 = vsub.f32 %v12, %v17
    %v19 = vmul.f32 %v18, 1.442695
    %v20 = vpow.pop %v19
    %v21 = vsel %vm14, %v20, 0.0
    %22 = vadd.xlane.f32.xlu0 %v21
    %v23 = vpop.xlane.xlu0 %22
    %v24 = vlog2.pop %v23
    %v25 = vmul.f32 %v24, 0.6931472
    %v26 = vlaneseq
    %v27 = vand.u32 %v26, 127
    %28 = vset.pattern.permute.xlu0 0
    %29 = vperm.xlu0 %28, %v13
    %v30 = vpop.permute.xlu0 %29
    %vm31 = vcmp.eq.s32.totalorder %v27, %v30
    %v32 = vsel %vm31, %v18, 0.0
    %v33 = vsel %vm14, %v32, 0.0
    %34 = vadd.xlane.f32.xlu0 %v33
    %v35 = vpop.xlane.xlu0 %34
    %v36 = vsub.f32 %v35, %v25
    %v37 = vsub.f32 0.0, %v36
    %v38 = vmul.f32 %v36, 1.442695
    %v39 = vpow.pop %v38
    %v40 = vsub.f32 1.0, %v39
    %v41 = vmul.f32 %v40, %v40
    %v42 = vmul.f32 %v41, %v37
    %v43 = vlaneseq
    %v44 = vshrl.u32 %v43, 7
    %s45 = smul.u32 0, 8
    %v46 = vstv %s45
    %v47 = vadd.s32 %v46, %v44
    %vm48 = vcmp.lt.s32.totalorder %v47, 8
    %v49 = vsel %vm48, %v42, 0.0
    %vm50 = vcmask 7168
    %v51 = vsel %vm50, %v49, 0.0
    %52 = vadd.xlane.f32.xlu0 %v51
    %v53 = vpop.xlane.xlu0 %52
    %v54 = vrot.slane %v53, 4
    %v55 = vadd.f32 %v53, %v54
    %v56 = vrot.slane %v55, 2
    %v57 = vadd.f32 %v55, %v56
    %v58 = vrot.slane %v57, 1
    %v59 = vadd.f32 %v57, %v58
    %s60 = vtos %v59
    %v61 = vstv %s60
    %vm62 = vcmask 0
    %63 = vst.msk [vmem:[#allocation2] sm:$0x1] %vm62, %v61
    // Predicated region
    $region10: #{tpu_custom_call.1} parent=1 // pred_check
      _
    $region11: #{tpu_custom_call.1} parent=1 // pred_check_branch
      %65 = sbr.rel (0) target = $region13
    $region12: #{tpu_custom_call.1} parent=1 // pred_region
      %s67 = ssub.s32 16, 16
      %68 = vsyncadd [#allocation3], %s67
      %s70 = sshll.u32 [#allocation2], 4
      %s71 = int_to_ptr.vmem [resolvable:$true] %s70
      %73 = dma.vmem_to_hbm [thread:$0]  %s71, 16, %s2, [#allocation3]
    $region13: #{tpu_custom_call.1} parent=1 // pred_fallthru
      _
    // Predicated region
    $region14: #{tpu_custom_call.1} parent=1 // pred_check
      _
    $region15: #{tpu_custom_call.1} parent=1 // pred_check_branch
      %75 = sbr.rel (0) target = $region17
    $region16: #{tpu_custom_call.1} parent=1 // pred_region
      %76 = dma.done [#allocation3], 16
    $region17: #{tpu_custom_call.1} parent=1 // pred_fallthru
      _
    %77 = vsyncpa [#allocation3], 1

</llo_original>
